<compile_context>
chip_gen: v6e
topology: v6e:2x2x1
jax: 0.10.0
libtpu: 0.0.40
codegen_flags: <defaults>
</compile_context>

<pallas_src>
import functools

import jax
import jax.numpy as jnp
from jax import lax
from jax.experimental import pallas as pl
from jax.experimental.pallas import tpu as pltpu

LANE = 128
_LIVE_BUDGET_BYTES = 16 * 1024 * 1024   # live double-buffered blocks per grid step
_VMEM_LIMIT_BYTES = 32 * 1024 * 1024    # scoped VMEM limit for every pallas_call
_MAX_TILE_LANES = 16384                 # amortization cap; review: allow >2048 lanes


def _choose_hw_tile(hw, c):
    """Lane tile for the HW axis: VMEM budget first, then clipped to HW (lane aligned)."""
    # Pass 3 dominates the footprint: 2x input (C,T) + 2x output (C,T) blocks
    # (double-buffered) + ~3 f32 (C,T) temps  ->  ~7 * C * T * 4 bytes (f32 worst case).
    per_lane_bytes = 7 * 4 * max(c, 1)
    t = _LIVE_BUDGET_BYTES // per_lane_bytes
    t = min(t, _MAX_TILE_LANES, max(LANE, (hw // LANE) * LANE))
    return max(LANE, (t // LANE) * LANE)


# ---------------------------------------------------------------------------
# Pass 1: partial sum/max pooling over the spatial (lane) axis, tiled over HW,
# split into super-chunks along grid axis 1 (parallel) for megacore sharding.
# ---------------------------------------------------------------------------
def _channel_pool_kernel(x_ref, o_ref, sum_acc, max_acc, *,
                         hw, hw_tile, tiles_per_chunk, chunk_overlap):
    s = pl.program_id(1)
    t = pl.program_id(2)

    @pl.when(t == 0)
    def _():
        sum_acc[...] = jnp.zeros_like(sum_acc)
        max_acc[...] = jnp.full_like(max_acc, -jnp.inf)

    # Tile index actually fetched by the BlockSpec: chunk 1 is shifted left by
    # `chunk_overlap` tiles so it never indexes past the array; those re-read
    # (duplicate) tiles are skipped below to avoid double counting.
    blk = s * tiles_per_chunk + t - s * chunk_overlap
    start = blk * hw_tile
    is_dup = jnp.logical_and(s > 0, t < chunk_overlap)
    full = jnp.logical_and(jnp.logical_not(is_dup), start + hw_tile <= hw)
    ragged = jnp.logical_and(jnp.logical_not(is_dup), start + hw_tile > hw)

    x = x_ref[0].astype(jnp.float32)                               # (C, T)

    @pl.when(full)     # unmasked hot path: every tile except the ragged tail
    def _():
        sum_acc[...] += jnp.sum(x, axis=-1, keepdims=True)
        max_acc[...] = jnp.maximum(max_acc[...],
                                   jnp.max(x, axis=-1, keepdims=True))

    @pl.when(ragged)   # ragged last tile: mask lanes >= HW (reads there are garbage)
    def _():
        lane = lax.broadcasted_iota(jnp.int32, x.shape, 1) + start
        valid = lane < hw
        sum_acc[...] += jnp.sum(jnp.where(valid, x, 0.0), axis=-1, keepdims=True)
        max_acc[...] = jnp.maximum(
            max_acc[...],
            jnp.max(jnp.where(valid, x, -jnp.inf), axis=-1, keepdims=True))

    @pl.when(t == pl.num_programs(2) - 1)
    def _():
        # [partial_sum, partial_max]; averaged / combined in the JAX glue.
        o_ref[0, 0] = jnp.concatenate([sum_acc[...], max_acc[...]], axis=-1)


# ---------------------------------------------------------------------------
# Pass 2: fp = gate * f (never stored), channel-wise max / mean per pixel.
# Ragged tail columns compute garbage but land on out-of-bounds output lanes,
# which Pallas drops on write (the reduction here is over C, not over lanes).
# ---------------------------------------------------------------------------
def _spatial_pool_kernel(x_ref, g_ref, o_ref, *, c):
    fp = x_ref[0].astype(jnp.float32) * g_ref[0]                  # (C, T) * (C, 1)
    cmax = jnp.max(fp, axis=0, keepdims=True)                     # (1, T)
    cavg = jnp.sum(fp, axis=0, keepdims=True) * (1.0 / c)         # (1, T)
    # torch.cat([max_pool, avg_pool], dim=1)
    o_ref[0] = jnp.concatenate([cmax, cavg], axis=0)              # (2, T)


# ---------------------------------------------------------------------------
# Pass 3: fpp = spatial_gate * (channel_gate * f)   -- the gated activation.
# ---------------------------------------------------------------------------
def _apply_kernel(x_ref, g_ref, s_ref, o_ref):
    fp = x_ref[0].astype(jnp.float32) * g_ref[0]                  # (C, T)
    o_ref[0] = (fp * s_ref[0]).astype(o_ref.dtype)                # (1, T) bcast over C


def cbam_forward(x, w1, b1, w2, b2, conv_w, conv_b):
    """CBAM forward.  x: (N, C, H, W).  Returns (fpp, spat_att), each (N, C, H, W).

    w1 (M, C), b1 (M,), w2 (C, M), b2 (C,) : bottleneck Linear params (PyTorch layout).
    conv_w (1, 2, K, K), conv_b (1,)       : spatial-attention conv (channels [max, avg]).
    """
    N, C, H, W = x.shape
    HW = H * W
    T = _choose_hw_tile(HW, C)
    n_t = (HW + T - 1) // T
    # Super-chunk split of the HW reduction (megacore-friendly even at N == 1).
    n_chunks = 2 if n_t >= 2 else 1
    tiles_per_chunk = (n_t + n_chunks - 1) // n_chunks
    chunk_overlap = n_chunks * tiles_per_chunk - n_t   # 0 or 1 extra (re-read) tile

    x_flat = x.reshape(N, C, HW)      # metadata-only reshape; no padded HBM copy

    def _x_map(n, s, t):
        # Affine only: chunk 1 is shifted left by `chunk_overlap` so no block ever
        # starts past the array; the kernel skips the duplicated tiles.
        return (n, 0, s * tiles_per_chunk + t - s * chunk_overlap)

    # ---- Pass 1: sum/max pooling over HW (streaming reduction) --------------
    pooled = pl.pallas_call(
        functools.partial(_channel_pool_kernel, hw=HW, hw_tile=T,
                          tiles_per_chunk=tiles_per_chunk,
                          chunk_overlap=chunk_overlap),
        out_shape=jax.ShapeDtypeStruct((N, n_chunks, C, 2), jnp.float32),
        grid_spec=pltpu.PrefetchScalarGridSpec(
            num_scalar_prefetch=0,
            grid=(N, n_chunks, tiles_per_chunk),
            in_specs=[pl.BlockSpec((1, C, T), _x_map)],
            out_specs=pl.BlockSpec((1, 1, C, 2), lambda n, s, t: (n, s, 0, 0)),
            scratch_shapes=[pltpu.VMEM((C, 1), jnp.float32),
                            pltpu.VMEM((C, 1), jnp.float32)],
        ),
        compiler_params=pltpu.CompilerParams(
            dimension_semantics=("parallel", "parallel", "arbitrary"),
            vmem_limit_bytes=_VMEM_LIMIT_BYTES),
    )(x_flat)

    # ---- Combine partials + bottleneck MLP (hoisted out of the tile loop) ----
    # One well-shaped (2N, C) x (C, M) matmul instead of 4N matrix-vector ops.
    avg_pool = jnp.sum(pooled[..., 0], axis=1) * (1.0 / HW)       # (N, C)
    max_pool = jnp.max(pooled[..., 1], axis=1)                    # (N, C)
    stacked = jnp.concatenate([avg_pool, max_pool], axis=0)       # (2N, C)
    hidden = jnp.maximum(stacked @ w1.T + b1[None, :], 0.0)       # (2N, M)
    bottled = hidden @ w2.T + b2[None, :]                         # (2N, C)
    gate = jax.nn.sigmoid(bottled[:N] + bottled[N:])              # (N, C) channel gate
    gate3 = gate.reshape(N, C, 1).astype(jnp.float32)

    # ---- Pass 2: spatial pooling of the (virtual) gated activation -----------
    cpool = pl.pallas_call(
        functools.partial(_spatial_pool_kernel, c=C),
        out_shape=jax.ShapeDtypeStruct((N, 2, HW), jnp.float32),
        grid_spec=pltpu.PrefetchScalarGridSpec(
            num_scalar_prefetch=0,
            grid=(N, n_t),
            in_specs=[pl.BlockSpec((1, C, T), lambda n, t: (n, 0, t)),
                      pl.BlockSpec((1, C, 1), lambda n, t: (n, 0, 0))],
            out_specs=pl.BlockSpec((1, 2, T), lambda n, t: (n, 0, t)),
        ),
        compiler_params=pltpu.CompilerParams(
            dimension_semantics=("parallel", "parallel"),
            vmem_limit_bytes=_VMEM_LIMIT_BYTES),
    )(x_flat, gate3)

    # ---- Tiny KxK (2 -> 1) spatial conv + sigmoid ----------------------------
    # TODO(synk): negligible-work (N, 2, H, W) -> (N, 1, H, W) conv runs as plain
    # JAX between the two streaming Pallas passes (like the bottleneck MLP above).
    K = conv_w.shape[-1]
    pad = (K - 1) // 2
    pool_map = cpool.reshape(N, 2, H, W)
    conv = lax.conv_general_dilated(
        pool_map, conv_w.astype(jnp.float32), window_strides=(1, 1),
        padding=((pad, pad), (pad, pad)),
        dimension_numbers=("NCHW", "OIHW", "NCHW"))
    smap = jax.nn.sigmoid(conv + conv_b.reshape(1, 1, 1, 1))      # (N, 1, H, W)
    smap_flat = smap.reshape(N, 1, HW)

    # ---- Pass 3: fpp = smap * (gate * f)  (only full-size write) -------------
    fpp_flat = pl.pallas_call(
        _apply_kernel,
        out_shape=jax.ShapeDtypeStruct((N, C, HW), x.dtype),
        grid_spec=pltpu.PrefetchScalarGridSpec(
            num_scalar_prefetch=0,
            grid=(N, n_t),
            in_specs=[pl.BlockSpec((1, C, T), lambda n, t: (n, 0, t)),
                      pl.BlockSpec((1, C, 1), lambda n, t: (n, 0, 0)),
                      pl.BlockSpec((1, 1, T), lambda n, t: (n, 0, t))],
            out_specs=pl.BlockSpec((1, C, T), lambda n, t: (n, 0, t)),
        ),
        compiler_params=pltpu.CompilerParams(
            dimension_semantics=("parallel", "parallel"),
            vmem_limit_bytes=_VMEM_LIMIT_BYTES),
    )(x_flat, gate3, smap_flat)

    fpp = fpp_flat.reshape(N, C, H, W)
    # The module contract returns the spatial gate repeated over C; the broadcast
    # happens here, outside the bandwidth-critical kernels.
    spat_att = jnp.broadcast_to(smap, (N, C, H, W))
    return fpp, spat_att


# ---------------------------------------------------------------------------
# Pure-JAX reference matching the PyTorch CBAM.forward exactly.
# ---------------------------------------------------------------------------
def cbam_ref(x, w1, b1, w2, b2, conv_w, conv_b):
    N, C, H, W = x.shape
    avg_pool = jnp.mean(x, axis=(2, 3))
    max_pool = jnp.max(x, axis=(2, 3))

    def bottleneck(p):
        h = jnp.maximum(p @ w1.T + b1[None, :], 0.0)
        return h @ w2.T + b2[None, :]

    gate = jax.nn.sigmoid(bottleneck(avg_pool) + bottleneck(max_pool))   # (N, C)
    fp = jnp.broadcast_to(gate[:, :, None, None], (N, C, H, W)) * x

    cmax = jnp.max(fp, axis=1, keepdims=True)
    cavg = jnp.mean(fp, axis=1, keepdims=True)
    pool = jnp.concatenate([cmax, cavg], axis=1)                          # (N, 2, H, W)
    K = conv_w.shape[-1]
    pad = (K - 1) // 2
    conv = lax.conv_general_dilated(
        pool, conv_w, (1, 1), ((pad, pad), (pad, pad)),
        dimension_numbers=("NCHW", "OIHW", "NCHW"))
    conv = conv + conv_b.reshape(1, 1, 1, 1)
    spat_att = jax.nn.sigmoid(jnp.broadcast_to(conv, (N, C, H, W)))
    fpp = spat_att * fp
    return fpp, spat_att


if __name__ == "__main__":
    # CBAM(n_channels_in=4, reduction_ratio=2, kernel_size=3)
    N, C, H, W = 2, 4, 16, 16
    reduction_ratio = 2
    K = 3
    M = int(C / float(reduction_ratio))

    key = jax.random.PRNGKey(0)
    kx, k1, k2, k3, k4, k5, k6 = jax.random.split(key, 7)

    x = jax.random.normal(kx, (N, C, H, W), dtype=jnp.float32)

    # PyTorch nn.Linear convention: weight (out, in), bias (out,)
    w1 = jax.random.normal(k1, (M, C), dtype=jnp.float32) * 0.5
    b1 = jax.random.normal(k2, (M,), dtype=jnp.float32) * 0.1
    w2 = jax.random.normal(k3, (C, M), dtype=jnp.float32) * 0.5
    b2 = jax.random.normal(k4, (C,), dtype=jnp.float32) * 0.1
    # nn.Conv2d(2, 1, kernel_size=3, padding=1): weight (1, 2, 3, 3), bias (1,)
    conv_w = jax.random.normal(k5, (1, 2, K, K), dtype=jnp.float32) * 0.3
    conv_b = jax.random.normal(k6, (1,), dtype=jnp.float32) * 0.1

    fwd = jax.jit(cbam_forward)
    fpp, spat_att = fwd(x, w1, b1, w2, b2, conv_w, conv_b)
    fpp = jax.block_until_ready(fpp)
    spat_att = jax.block_until_ready(spat_att)

    fpp_ref, spat_ref = cbam_ref(x, w1, b1, w2, b2, conv_w, conv_b)
    assert fpp.shape == (N, C, H, W) and spat_att.shape == (N, C, H, W)
    assert jnp.allclose(spat_att, spat_ref, atol=1e-5, rtol=1e-5), "spat_att mismatch"
    assert jnp.allclose(fpp, fpp_ref, atol=1e-5, rtol=1e-5), "fpp mismatch"

    print("KERNEL_OK")
</pallas_src>

<mosaic_0001>
module attributes {stable_mosaic.version = 11 : i64} {
  func.func @_channel_pool_kernel(%arg0: i32, %arg1: i32, %arg2: i32, %arg3: memref<1x4x256xf32, #tpu.memory_space<vmem>>, %arg4: memref<1x1x4x2xf32, #tpu.memory_space<vmem>>, %arg5: memref<4x1xf32, #tpu.memory_space<vmem>>, %arg6: memref<4x1xf32, #tpu.memory_space<vmem>>) attributes {dimension_semantics = [#tpu.dimension_semantics<parallel>, #tpu.dimension_semantics<parallel>, #tpu.dimension_semantics<arbitrary>], iteration_bounds = array<i64: 2, 1, 1>, scalar_prefetch = 0 : i64, scratch_operands = 2 : i64, tpu.core_type = #tpu.core_type<tc>, window_params = [{transform_indices = @transform_0, window_bounds = array<i64: 1, 4, 256>}, {transform_indices = @transform_1, window_bounds = array<i64: 1, 1, 4, 2>}]} {
    %c0_i32 = arith.constant 0 : i32
    %0 = arith.cmpi eq, %arg2, %c0_i32 : i32
    %1 = arith.extui %0 : i1 to i32
    %c0_i32_0 = arith.constant 0 : i32
    %2 = arith.cmpi ne, %1, %c0_i32_0 : i32
    scf.if %2 {
      %cst = arith.constant 0.000000e+00 : f32
      %28 = vector.broadcast %cst : f32 to vector<4x1xf32>
      %c0_15 = arith.constant 0 : index
      %c0_16 = arith.constant 0 : index
      %29 = vector.load %arg5[%c0_15, %c0_16] : memref<4x1xf32, #tpu.memory_space<vmem>>, vector<4x1xf32>
      tpu.vector_store %arg5[%c0_15, %c0_16], %28 {strides = array<i32>} : memref<4x1xf32, #tpu.memory_space<vmem>>, vector<4x1xf32>,
      %cst_17 = arith.constant 0xFF800000 : f32
      %30 = vector.broadcast %cst_17 : f32 to vector<4x1xf32>
      %c0_18 = arith.constant 0 : index
      %c0_19 = arith.constant 0 : index
      %31 = vector.load %arg6[%c0_18, %c0_19] : memref<4x1xf32, #tpu.memory_space<vmem>>, vector<4x1xf32>
      tpu.vector_store %arg6[%c0_18, %c0_19], %30 {strides = array<i32>} : memref<4x1xf32, #tpu.memory_space<vmem>>, vector<4x1xf32>,
    } else {
    }
    %c1_i32 = arith.constant 1 : i32
    %3 = arith.muli %arg1, %c1_i32 : i32
    %4 = arith.addi %3, %arg2 : i32
    %c0_i32_1 = arith.constant 0 : i32
    %5 = arith.muli %arg1, %c0_i32_1 : i32
    %6 = arith.subi %4, %5 : i32
    %c256_i32 = arith.constant 256 : i32
    %7 = arith.muli %6, %c256_i32 : i32
    %c0_i32_2 = arith.constant 0 : i32
    %8 = arith.cmpi sgt, %arg1, %c0_i32_2 : i32
    %c0_i32_3 = arith.constant 0 : i32
    %9 = arith.cmpi slt, %arg2, %c0_i32_3 : i32
    %10 = arith.andi %8, %9 : i1
    %true = arith.constant true
    %11 = arith.xori %10, %true : i1
    %c256_i32_4 = arith.constant 256 : i32
    %12 = arith.addi %7, %c256_i32_4 : i32
    %c256_i32_5 = arith.constant 256 : i32
    %13 = arith.cmpi sle, %12, %c256_i32_5 : i32
    %14 = arith.andi %11, %13 : i1
    %true_6 = arith.constant true
    %15 = arith.xori %10, %true_6 : i1
    %c256_i32_7 = arith.constant 256 : i32
    %16 = arith.addi %7, %c256_i32_7 : i32
    %c256_i32_8 = arith.constant 256 : i32
    %17 = arith.cmpi sgt, %16, %c256_i32_8 : i32
    %18 = arith.andi %15, %17 : i1
    %c0 = arith.constant 0 : index
    %c0_9 = arith.constant 0 : index
    %c0_10 = arith.constant 0 : index
    %19 = vector.load %arg3[%c0, %c0_9, %c0_10] : memref<1x4x256xf32, #tpu.memory_space<vmem>>, vector<1x4x256xf32>
    %20 = vector.shape_cast %19 : vector<1x4x256xf32> to vector<4x256xf32>
    %21 = arith.extui %14 : i1 to i32
    %c0_i32_11 = arith.constant 0 : i32
    %22 = arith.cmpi ne, %21, %c0_i32_11 : i32
    scf.if %22 {
      %c0_15 = arith.constant 0 : index
      %c0_16 = arith.constant 0 : index
      %28 = vector.load %arg5[%c0_15, %c0_16] : memref<4x1xf32, #tpu.memory_space<vmem>>, vector<4x1xf32>
      %cst = arith.constant dense<0.000000e+00> : vector<4xf32>
      %29 = vector.multi_reduction <add>, %20, %cst [1] : vector<4x256xf32> to vector<4xf32>
      %30 = vector.shape_cast %29 : vector<4xf32> to vector<4x1xf32>
      %31 = arith.addf %28, %30 : vector<4x1xf32>
      %c0_17 = arith.constant 0 : index
      %c0_18 = arith.constant 0 : index
      %32 = vector.load %arg5[%c0_17, %c0_18] : memref<4x1xf32, #tpu.memory_space<vmem>>, vector<4x1xf32>
      tpu.vector_store %arg5[%c0_17, %c0_18], %31 {strides = array<i32>} : memref<4x1xf32, #tpu.memory_space<vmem>>, vector<4x1xf32>,
      %c0_19 = arith.constant 0 : index
      %c0_20 = arith.constant 0 : index
      %33 = vector.load %arg6[%c0_19, %c0_20] : memref<4x1xf32, #tpu.memory_space<vmem>>, vector<4x1xf32>
      %cst_21 = arith.constant dense<0xFF800000> : vector<4xf32>
      %34 = vector.multi_reduction <maximumf>, %20, %cst_21 [1] : vector<4x256xf32> to vector<4xf32>
      %35 = vector.shape_cast %34 : vector<4xf32> to vector<4x1xf32>
      %36 = arith.maximumf %33, %35 : vector<4x1xf32>
      %c0_22 = arith.constant 0 : index
      %c0_23 = arith.constant 0 : index
      %37 = vector.load %arg6[%c0_22, %c0_23] : memref<4x1xf32, #tpu.memory_space<vmem>>, vector<4x1xf32>
      tpu.vector_store %arg6[%c0_22, %c0_23], %36 {strides = array<i32>} : memref<4x1xf32, #tpu.memory_space<vmem>>, vector<4x1xf32>,
    } else {
    }
    %23 = arith.extui %18 : i1 to i32
    %c0_i32_12 = arith.constant 0 : i32
    %24 = arith.cmpi ne, %23, %c0_i32_12 : i32
    scf.if %24 {
      %28 = tpu.iota {dimensions = array<i32: 1>} : vector<4x256xi32>
      %29 = vector.broadcast %7 : i32 to vector<4x256xi32>
      %30 = arith.addi %28, %29 : vector<4x256xi32>
      %c256_i32_15 = arith.constant 256 : i32
      %31 = vector.broadcast %c256_i32_15 : i32 to vector<4x256xi32>
      %32 = arith.cmpi slt, %30, %31 : vector<4x256xi32>
      %c0_16 = arith.constant 0 : index
      %c0_17 = arith.constant 0 : index
      %33 = vector.load %arg5[%c0_16, %c0_17] : memref<4x1xf32, #tpu.memory_space<vmem>>, vector<4x1xf32>
      %cst = arith.constant 0.000000e+00 : f32
      %34 = vector.broadcast %cst : f32 to vector<4x256xf32>
      %35 = arith.select %32, %20, %34 : vector<4x256xi1>, vector<4x256xf32>
      %cst_18 = arith.constant dense<0.000000e+00> : vector<4xf32>
      %36 = vector.multi_reduction <add>, %35, %cst_18 [1] : vector<4x256xf32> to vector<4xf32>
      %37 = vector.shape_cast %36 : vector<4xf32> to vector<4x1xf32>
      %38 = arith.addf %33, %37 : vector<4x1xf32>
      %c0_19 = arith.constant 0 : index
      %c0_20 = arith.constant 0 : index
      %39 = vector.load %arg5[%c0_19, %c0_20] : memref<4x1xf32, #tpu.memory_space<vmem>>, vector<4x1xf32>
      tpu.vector_store %arg5[%c0_19, %c0_20], %38 {strides = array<i32>} : memref<4x1xf32, #tpu.memory_space<vmem>>, vector<4x1xf32>,
      %c0_21 = arith.constant 0 : index
      %c0_22 = arith.constant 0 : index
      %40 = vector.load %arg6[%c0_21, %c0_22] : memref<4x1xf32, #tpu.memory_space<vmem>>, vector<4x1xf32>
      %cst_23 = arith.constant 0xFF800000 : f32
      %41 = vector.broadcast %cst_23 : f32 to vector<4x256xf32>
      %42 = arith.select %32, %20, %41 : vector<4x256xi1>, vector<4x256xf32>
      %cst_24 = arith.constant dense<0xFF800000> : vector<4xf32>
      %43 = vector.multi_reduction <maximumf>, %42, %cst_24 [1] : vector<4x256xf32> to vector<4xf32>
      %44 = vector.shape_cast %43 : vector<4xf32> to vector<4x1xf32>
      %45 = arith.maximumf %40, %44 : vector<4x1xf32>
      %c0_25 = arith.constant 0 : index
      %c0_26 = arith.constant 0 : index
      %46 = vector.load %arg6[%c0_25, %c0_26] : memref<4x1xf32, #tpu.memory_space<vmem>>, vector<4x1xf32>
      tpu.vector_store %arg6[%c0_25, %c0_26], %45 {strides = array<i32>} : memref<4x1xf32, #tpu.memory_space<vmem>>, vector<4x1xf32>,
    } else {
    }
    %c0_i32_13 = arith.constant 0 : i32
    %25 = arith.cmpi eq, %arg2, %c0_i32_13 : i32
    %26 = arith.extui %25 : i1 to i32
    %c0_i32_14 = arith.constant 0 : i32
    %27 = arith.cmpi ne, %26, %c0_i32_14 : i32
    scf.if %27 {
      %c0_15 = arith.constant 0 : index
      %c0_16 = arith.constant 0 : index
      %28 = vector.load %arg5[%c0_15, %c0_16] : memref<4x1xf32, #tpu.memory_space<vmem>>, vector<4x1xf32>
      %c0_17 = arith.constant 0 : index
      %c0_18 = arith.constant 0 : index
      %29 = vector.load %arg6[%c0_17, %c0_18] : memref<4x1xf32, #tpu.memory_space<vmem>>, vector<4x1xf32>
      %30 = tpu.concatenate %28, %29 in 1 : vector<4x1xf32>, vector<4x1xf32> -> vector<4x2xf32>
      %c0_19 = arith.constant 0 : index
      %c0_20 = arith.constant 0 : index
      %c0_21 = arith.constant 0 : index
      %c0_22 = arith.constant 0 : index
      %31 = vector.load %arg4[%c0_19, %c0_20, %c0_21, %c0_22] : memref<1x1x4x2xf32, #tpu.memory_space<vmem>>, vector<1x1x4x2xf32>
      %32 = vector.shape_cast %31 : vector<1x1x4x2xf32> to vector<4x2xf32>
      %33 = vector.shape_cast %30 : vector<4x2xf32> to vector<1x1x4x2xf32>
      tpu.vector_store %arg4[%c0_19, %c0_20, %c0_21, %c0_22], %33 {strides = array<i32>} : memref<1x1x4x2xf32, #tpu.memory_space<vmem>>, vector<1x1x4x2xf32>,
    } else {
    }
    return
  }
  func.func @transform_0(%arg0: i32, %arg1: i32, %arg2: i32) -> (i32, i32, i32) {
    %c1_i32 = arith.constant 1 : i32
    %0 = arith.muli %arg1, %c1_i32 : i32
    %1 = arith.addi %0, %arg2 : i32
    %c0_i32 = arith.constant 0 : i32
    %2 = arith.muli %arg1, %c0_i32 : i32
    %3 = arith.subi %1, %2 : i32
    %c0_i32_0 = arith.constant 0 : i32
    %c0_i32_1 = arith.constant 0 : i32
    return %arg0, %c0_i32_0, %3 : i32, i32, i32
  }
  func.func @transform_1(%arg0: i32, %arg1: i32, %arg2: i32) -> (i32, i32, i32, i32) {
    %c0_i32 = arith.constant 0 : i32
    %c0_i32_0 = arith.constant 0 : i32
    %c0_i32_1 = arith.constant 0 : i32
    return %arg0, %arg1, %c0_i32, %c0_i32_0 : i32, i32, i32, i32
  }
}

module attributes {stable_mosaic.version = 11 : i64} {
  func.func @_spatial_pool_kernel(%arg0: i32, %arg1: i32, %arg2: memref<1x4x256xf32, #tpu.memory_space<vmem>>, %arg3: memref<1x4x1xf32, #tpu.memory_space<vmem>>, %arg4: memref<1x2x256xf32, #tpu.memory_space<vmem>>) attributes {dimension_semantics = [#tpu.dimension_semantics<parallel>, #tpu.dimension_semantics<parallel>], iteration_bounds = array<i64: 2, 1>, scalar_prefetch = 0 : i64, scratch_operands = 0 : i64, tpu.core_type = #tpu.core_type<tc>, window_params = [{transform_indices = @transform_0, window_bounds = array<i64: 1, 4, 256>}, {transform_indices = @transform_1, window_bounds = array<i64: 1, 4, 1>}, {transform_indices = @transform_2, window_bounds = array<i64: 1, 2, 256>}]} {
    %c0 = arith.constant 0 : index
    %c0_0 = arith.constant 0 : index
    %c0_1 = arith.constant 0 : index
    %0 = vector.load %arg2[%c0, %c0_0, %c0_1] : memref<1x4x256xf32, #tpu.memory_space<vmem>>, vector<1x4x256xf32>
    %1 = vector.shape_cast %0 : vector<1x4x256xf32> to vector<4x256xf32>
    %c0_2 = arith.constant 0 : index
    %c0_3 = arith.constant 0 : index
    %c0_4 = arith.constant 0 : index
    %2 = vector.load %arg3[%c0_2, %c0_3, %c0_4] : memref<1x4x1xf32, #tpu.memory_space<vmem>>, vector<1x4x1xf32>
    %3 = vector.shape_cast %2 : vector<1x4x1xf32> to vector<4x1xf32>
    %4 = vector.broadcast %3 : vector<4x1xf32> to vector<4x256xf32>
    %5 = arith.mulf %1, %4 : vector<4x256xf32>
    %cst = arith.constant dense<0xFF800000> : vector<256xf32>
    %6 = vector.multi_reduction <maximumf>, %5, %cst [0] : vector<4x256xf32> to vector<256xf32>
    %7 = vector.shape_cast %6 : vector<256xf32> to vector<1x256xf32>
    %cst_5 = arith.constant dense<0.000000e+00> : vector<256xf32>
    %8 = vector.multi_reduction <add>, %5, %cst_5 [0] : vector<4x256xf32> to vector<256xf32>
    %9 = vector.shape_cast %8 : vector<256xf32> to vector<1x256xf32>
    %cst_6 = arith.constant 2.500000e-01 : f32
    %10 = vector.broadcast %cst_6 : f32 to vector<1x256xf32>
    %11 = arith.mulf %9, %10 : vector<1x256xf32>
    %12 = tpu.concatenate %7, %11 in 0 : vector<1x256xf32>, vector<1x256xf32> -> vector<2x256xf32>
    %c0_7 = arith.constant 0 : index
    %c0_8 = arith.constant 0 : index
    %c0_9 = arith.constant 0 : index
    %13 = vector.load %arg4[%c0_7, %c0_8, %c0_9] : memref<1x2x256xf32, #tpu.memory_space<vmem>>, vector<1x2x256xf32>
    %14 = vector.shape_cast %13 : vector<1x2x256xf32> to vector<2x256xf32>
    %15 = vector.shape_cast %12 : vector<2x256xf32> to vector<1x2x256xf32>
    tpu.vector_store %arg4[%c0_7, %c0_8, %c0_9], %15 {strides = array<i32>} : memref<1x2x256xf32, #tpu.memory_space<vmem>>, vector<1x2x256xf32>,
    return
  }
  func.func @transform_0(%arg0: i32, %arg1: i32) -> (i32, i32, i32) {
    %c0_i32 = arith.constant 0 : i32
    %c0_i32_0 = arith.constant 0 : i32
    return %arg0, %c0_i32, %arg1 : i32, i32, i32
  }
  func.func @transform_1(%arg0: i32, %arg1: i32) -> (i32, i32, i32) {
    %c0_i32 = arith.constant 0 : i32
    %c0_i32_0 = arith.constant 0 : i32
    %c0_i32_1 = arith.constant 0 : i32
    return %arg0, %c0_i32, %c0_i32_0 : i32, i32, i32
  }
  func.func @transform_2(%arg0: i32, %arg1: i32) -> (i32, i32, i32) {
    %c0_i32 = arith.constant 0 : i32
    %c0_i32_0 = arith.constant 0 : i32
    return %arg0, %c0_i32, %arg1 : i32, i32, i32
  }
}

module attributes {stable_mosaic.version = 11 : i64} {
  func.func @_apply_kernel(%arg0: i32, %arg1: i32, %arg2: memref<1x4x256xf32, #tpu.memory_space<vmem>>, %arg3: memref<1x4x1xf32, #tpu.memory_space<vmem>>, %arg4: memref<1x1x256xf32, #tpu.memory_space<vmem>>, %arg5: memref<1x4x256xf32, #tpu.memory_space<vmem>>) attributes {dimension_semantics = [#tpu.dimension_semantics<parallel>, #tpu.dimension_semantics<parallel>], iteration_bounds = array<i64: 2, 1>, scalar_prefetch = 0 : i64, scratch_operands = 0 : i64, tpu.core_type = #tpu.core_type<tc>, window_params = [{transform_indices = @transform_0, window_bounds = array<i64: 1, 4, 256>}, {transform_indices = @transform_1, window_bounds = array<i64: 1, 4, 1>}, {transform_indices = @transform_2, window_bounds = array<i64: 1, 1, 256>}, {transform_indices = @transform_3, window_bounds = array<i64: 1, 4, 256>}]} {
    %c0 = arith.constant 0 : index
    %c0_0 = arith.constant 0 : index
    %c0_1 = arith.constant 0 : index
    %0 = vector.load %arg2[%c0, %c0_0, %c0_1] : memref<1x4x256xf32, #tpu.memory_space<vmem>>, vector<1x4x256xf32>
    %1 = vector.shape_cast %0 : vector<1x4x256xf32> to vector<4x256xf32>
    %c0_2 = arith.constant 0 : index
    %c0_3 = arith.constant 0 : index
    %c0_4 = arith.constant 0 : index
    %2 = vector.load %arg3[%c0_2, %c0_3, %c0_4] : memref<1x4x1xf32, #tpu.memory_space<vmem>>, vector<1x4x1xf32>
    %3 = vector.shape_cast %2 : vector<1x4x1xf32> to vector<4x1xf32>
    %4 = vector.broadcast %3 : vector<4x1xf32> to vector<4x256xf32>
    %5 = arith.mulf %1, %4 : vector<4x256xf32>
    %c0_5 = arith.constant 0 : index
    %c0_6 = arith.constant 0 : index
    %c0_7 = arith.constant 0 : index
    %6 = vector.load %arg4[%c0_5, %c0_6, %c0_7] : memref<1x1x256xf32, #tpu.memory_space<vmem>>, vector<1x1x256xf32>
    %7 = vector.shape_cast %6 : vector<1x1x256xf32> to vector<1x256xf32>
    %8 = vector.broadcast %7 : vector<1x256xf32> to vector<4x256xf32>
    %9 = arith.mulf %5, %8 : vector<4x256xf32>
    %c0_8 = arith.constant 0 : index
    %c0_9 = arith.constant 0 : index
    %c0_10 = arith.constant 0 : index
    %10 = vector.load %arg5[%c0_8, %c0_9, %c0_10] : memref<1x4x256xf32, #tpu.memory_space<vmem>>, vector<1x4x256xf32>
    %11 = vector.shape_cast %10 : vector<1x4x256xf32> to vector<4x256xf32>
    %12 = vector.shape_cast %9 : vector<4x256xf32> to vector<1x4x256xf32>
    tpu.vector_store %arg5[%c0_8, %c0_9, %c0_10], %12 {strides = array<i32>} : memref<1x4x256xf32, #tpu.memory_space<vmem>>, vector<1x4x256xf32>,
    return
  }
  func.func @transform_0(%arg0: i32, %arg1: i32) -> (i32, i32, i32) {
    %c0_i32 = arith.constant 0 : i32
    %c0_i32_0 = arith.constant 0 : i32
    return %arg0, %c0_i32, %arg1 : i32, i32, i32
  }
  func.func @transform_1(%arg0: i32, %arg1: i32) -> (i32, i32, i32) {
    %c0_i32 = arith.constant 0 : i32
    %c0_i32_0 = arith.constant 0 : i32
    %c0_i32_1 = arith.constant 0 : i32
    return %arg0, %c0_i32, %c0_i32_0 : i32, i32, i32
  }
  func.func @transform_2(%arg0: i32, %arg1: i32) -> (i32, i32, i32) {
    %c0_i32 = arith.constant 0 : i32
    %c0_i32_0 = arith.constant 0 : i32
    return %arg0, %c0_i32, %arg1 : i32, i32, i32
  }
  func.func @transform_3(%arg0: i32, %arg1: i32) -> (i32, i32, i32) {
    %c0_i32 = arith.constant 0 : i32
    %c0_i32_0 = arith.constant 0 : i32
    return %arg0, %c0_i32, %arg1 : i32, i32, i32
  }
}

</mosaic_0001>

<llo_original>
// kernel: cbam_forward.4
$region0: #{cbam_forward.4}
  #allocation0 [shape = 'u32[]', space=smem, size = 0x4, offset = 0x4, fixed_abs, tag = 'smem constant byte address 0x4 - core index']
  #allocation1 [shape = 'u32[144,128]{1,0:T(1,128)}', space=vmem, size = 0x12000, scoped, tag = 'internal scratch']
  %s0 = inlined_call_operand.vmem [shape: f32[2,4,256], index: 0, kind: input, shape index: {}]
  %s1 = inlined_call_operand.vmem [shape: f32[2,4,1], index: 1, kind: input, shape index: {}]
  %s2 = inlined_call_operand.vmem [shape: f32[2,2,256], index: 2, kind: output, shape index: {}]
  %s3 = sld [smem:[#allocation0]]
  $region41: #{cbam_forward.4} parent=0
    _
  %s5 = ssub.s32 1, %s3
  %s6 = scalar_select 0, %s5, %s3
  loop: start=0, step=1, limit=4
  $region2: #{cbam_forward.4} parent=0 // loop_pre_header
    _
  $region3: #{cbam_forward.4} parent=0 // loop_header
    %s8 = sphi 0, %s12
    %p9 = scmp.ge.s32.totalorder %s8, 4
    %s15 = sphi 0, %s27
    %s16 = sphi 0, %s23
    %s17 = sphi 0, %s15
    %s18 = sphi 0, %s16
    %s19 = sphi 0, %s17
    %s20 = sphi 0, %s18
    %s32 = sphi 0, %s34
    %s35 = sphi 0, %s32
    %s36 = sphi 0, %s35
    %s52 = sphi 0, %s36
    %s58 = sphi 0, %s60
    %s61 = sphi 0, %s58
    %s62 = sphi 0, %s61
    %s78 = sphi 0, %s62
    %s86 = sphi 0, %s88
    %s89 = sphi 0, %s86
    %s90 = sphi 0, %s89
    %s106 = sphi 0, %s90
  $region4: #{cbam_forward.4} parent=0 // loop_header_branch
    %11 = sbr.rel (%p9) target = $region8
  $region5: #{cbam_forward.4} parent=0 // loop_body
    %s13 = ssub.s32 %s8, 1
    %s14 = ssub.s32 %s8, 2
    %s21 = sadd.s32 1, %s16
    %p22 = scmp.ge.s32.totalorder %s21, 1
    %s23 = scalar_select %p22, 0, %s21
    %s24 = sadd.s32 1, %s15
    %s25 = scalar_select %p22, %s24, %s15
    %p26 = scmp.ge.s32.totalorder %s25, 2
    %s27 = scalar_select %p26, 0, %s25
    %s28 = ssub.s32 %s15, %s27
    %s29 = ssub.s32 %s16, %s23
    %s30 = sor.u32 %s28, %s29
    %p31 = scmp.eq.s32.totalorder %s30, 0
    %s33 = sadd.s32 %s32, 1
    %s34 = scalar_select %p31, %s32, %s33
    %p37 = pneg %p31
    %p38 = scmp.eq.s32.totalorder %s8, 1
    %p39 = por %p37, %p38
    %p40 = scmp.ne.s32.totalorder %s32, %s35
    %p41 = scmp.eq.s32.totalorder %s8, 0
    %p42 = por %p40, %p41
    %p43 = scmp.ne.s32.totalorder %s32, %s35
    %p44 = scmp.eq.s32.totalorder %s13, 1
    %p45 = por %p43, %p44
    %p46 = scmp.ne.s32.totalorder %s35, %s36
    %p47 = scmp.eq.s32.totalorder %s13, 0
    %p48 = por %p46, %p47
    %p49 = scmp.ne.s32.totalorder %s35, %s36
    %p50 = scmp.eq.s32.totalorder %s14, 1
    %p51 = por %p49, %p50
    %p53 = scmp.ne.s32.totalorder %s36, %s52
    %p54 = scmp.eq.s32.totalorder %s14, 0
    %p55 = por %p53, %p54
    %s56 = ssub.s32 %s15, %s27
    %p57 = scmp.eq.s32.totalorder %s56, 0
    %s59 = sadd.s32 %s58, 1
    %s60 = scalar_select %p57, %s58, %s59
    %p63 = pneg %p57
    %p64 = scmp.eq.s32.totalorder %s8, 1
    %p65 = por %p63, %p64
    %p66 = scmp.ne.s32.totalorder %s58, %s61
    %p67 = scmp.eq.s32.totalorder %s8, 0
    %p68 = por %p66, %p67
    %p69 = scmp.ne.s32.totalorder %s58, %s61
    %p70 = scmp.eq.s32.totalorder %s13, 1
    %p71 = por %p69, %p70
    %p72 = scmp.ne.s32.totalorder %s61, %s62
    %p73 = scmp.eq.s32.totalorder %s13, 0
    %p74 = por %p72, %p73
    %p75 = scmp.ne.s32.totalorder %s61, %s62
    %p76 = scmp.eq.s32.totalorder %s14, 1
    %p77 = por %p75, %p76
    %p79 = scmp.ne.s32.totalorder %s62, %s78
    %p80 = scmp.eq.s32.totalorder %s14, 0
    %p81 = por %p79, %p80
    %s82 = ssub.s32 %s15, %s27
    %s83 = ssub.s32 %s16, %s23
    %s84 = sor.u32 %s82, %s83
    %p85 = scmp.eq.s32.totalorder %s84, 0
    %s87 = sadd.s32 %s86, 1
    %s88 = scalar_select %p85, %s86, %s87
    %p91 = pneg %p85
    %p92 = scmp.eq.s32.totalorder %s8, 1
    %p93 = por %p91, %p92
    %p94 = scmp.ne.s32.totalorder %s86, %s89
    %p95 = scmp.eq.s32.totalorder %s8, 0
    %p96 = por %p94, %p95
    %p97 = scmp.ne.s32.totalorder %s86, %s89
    %p98 = scmp.eq.s32.totalorder %s13, 1
    %p99 = por %p97, %p98
    %p100 = scmp.ne.s32.totalorder %s89, %s90
    %p101 = scmp.eq.s32.totalorder %s13, 0
    %p102 = por %p100, %p101
    %p103 = scmp.ne.s32.totalorder %s89, %s90
    %p104 = scmp.eq.s32.totalorder %s14, 1
    %p105 = por %p103, %p104
    %p107 = scmp.ne.s32.totalorder %s90, %s106
    %p108 = scmp.eq.s32.totalorder %s14, 0
    %p109 = por %p107, %p108
    %p110 = scmp.le.s32.totalorder 1, %s8
    %p111 = scmp.lt.s32.totalorder %s8, 3
    %p112 = pnand %p110, %p111
    %p113 = pneg %p112
    // Predicated region
    $region9: #{cbam_forward.4} parent=5 // pred_check
      _
    $region10: #{cbam_forward.4} parent=5 // pred_check_branch
      %115 = sbr.rel (%p112) target = $region12
    $region11: #{cbam_forward.4} parent=5 // pred_region
      %s116 = ssub.s32 %s8, 1
    $region12: #{cbam_forward.4} parent=5 // pred_fallthru
      _
    %p117 = scmp.lt.s32.totalorder %s8, 2
    // Predicated region
    $region13: #{cbam_forward.4} parent=5 // pred_check
      %p118 = pneg %p117
    $region14: #{cbam_forward.4} parent=5 // pred_check_branch
      %120 = sbr.rel (%p118) target = $region16
    $region15: #{cbam_forward.4} parent=5 // pred_region
      // Predicated region
      $region17: #{cbam_forward.4} parent=15 // pred_check
        %p121 = pneg %p42
      $region18: #{cbam_forward.4} parent=15 // pred_check_branch
        %123 = sbr.rel (%p121) target = $region20
      $region19: #{cbam_forward.4} parent=15 // pred_region
        %s124 = smul.u32 2, %s16
        %p125 = scmp.lt.s32.totalorder %s15, 1
        %s126 = scalar_select %p125, %s15, 1
        %p127 = scmp.lt.s32.totalorder %s124, 1
        %s128 = scalar_select %p127, %s124, 1
        %s129 = smul.addr %s126, 2
        %s130 = sadd.s32 %s128, %s129
        %s131 = smul.addr %s130, 4
        %s132 = scalar_lea.vmem %s0, %s131
        %s133 = smul.u32 2, %s16
      $region20: #{cbam_forward.4} parent=15 // pred_fallthru
        _
      // Predicated region
      $region21: #{cbam_forward.4} parent=15 // pred_check
        %p134 = pneg %p68
      $region22: #{cbam_forward.4} parent=15 // pred_check_branch
        %136 = sbr.rel (%p134) target = $region24
      $region23: #{cbam_forward.4} parent=15 // pred_region
        %p137 = scmp.lt.s32.totalorder %s15, 1
        %s138 = scalar_select %p137, %s15, 1
        %s139 = smul.addr %s138, 4
        %s140 = scalar_lea.vmem %s1, %s139
      $region24: #{cbam_forward.4} parent=15 // pred_fallthru
        _
    $region16: #{cbam_forward.4} parent=5 // pred_fallthru
      _
    %p141 = scmp.le.s32.totalorder 1, %s8
    %p142 = scmp.lt.s32.totalorder %s8, 3
    %p143 = pnand %p141, %p142
    %p144 = pneg %p143
    // Predicated region
    $region25: #{cbam_forward.4} parent=5 // pred_check
      _
    $region26: #{cbam_forward.4} parent=5 // pred_check_branch
      %146 = sbr.rel (%p143) target = $region28
    $region27: #{cbam_forward.4} parent=5 // pred_region
      %s147 = ssub.s32 %s8, 1
      %s148 = smul.u32 2, %s18
      %p149 = scmp.lt.s32.totalorder %s17, 1
      %s150 = scalar_select %p149, %s17, 1
      %p151 = scmp.lt.s32.totalorder %s148, 1
      %s152 = scalar_select %p151, %s148, 1
      %s153 = smul.addr %s150, 2
      %s154 = sadd.s32 %s152, %s153
      %s155 = smul.addr %s154, 4
      %s156 = scalar_lea.vmem %s0, %s155
      %p157 = pneg %p48
      %p158 = pneg %p45
      %p159 = scmp.lt.s32.totalorder %s17, 1
      %s160 = scalar_select %p159, %s17, 1
      %s161 = smul.addr %s160, 4
      %s162 = scalar_lea.vmem %s1, %s161
      %p163 = pneg %p74
      %p164 = pneg %p71
      %p165 = pneg %p102
      %p166 = pneg %p99
      %s167 = smul.u32 2, %s18
      %p168 = scmp.lt.s32.totalorder %s17, 1
      %s169 = scalar_select %p168, %s17, 1
      %p170 = scmp.lt.s32.totalorder %s167, 1
      %s171 = scalar_select %p170, %s167, 1
      %s172 = smul.addr %s169, 2
      %s173 = sadd.s32 %s171, %s172
      %s174 = smul.addr %s173, 2
      %s175 = scalar_lea.vmem %s2, %s174
      %s176 = smul.u32 2, %s18
      %p177 = scmp.lt.s32.totalorder %s17, 1
      %s178 = scalar_select %p177, %s17, 1
      %p179 = scmp.lt.s32.totalorder %s176, 1
      %s180 = scalar_select %p179, %s176, 1
      %s181 = smul.addr %s178, 2
      %s182 = sadd.s32 %s180, %s181
      %s183 = smul.addr %s182, 4
      %s184 = scalar_lea.vmem %s0, %s183
      %s185 = smul.u32 2, %s18
      %p186 = scmp.lt.s32.totalorder %s17, 1
      %s187 = scalar_select %p186, %s17, 1
      %s188 = smul.addr %s187, 4
      %s189 = scalar_lea.vmem %s1, %s188
      %s190 = smul.u32 2, %s18
      %p191 = scmp.lt.s32.totalorder %s17, 1
      %s192 = scalar_select %p191, %s17, 1
      %p193 = scmp.lt.s32.totalorder %s190, 1
      %s194 = scalar_select %p193, %s190, 1
      %s195 = smul.addr %s192, 2
      %s196 = sadd.s32 %s194, %s195
      %s197 = smul.addr %s196, 2
      %s198 = scalar_lea.vmem %s2, %s197
      %s199 = smul.u32 2, %s18
      %v200 = vld [vmem:[%s184] sm:$0xff]
      %v201 = vld [vmem:[%s189] sm:$0xf]
      %203 = vset.pattern.permute.xlu0 0
      %204 = vperm.xlu0 %203, %v201
      %v205 = vpop.permute.xlu0 %204
      %v207 = vunpack.c.l.s4 839922192
      %v208 = vunpack.c.0.s8 %v207
      %v209 = vlaneseq
      %v210 = vshrl.u32 %v209, 7
      %v211 = vsub.s32 %v208, %v210
      %v212 = vrot.slane %v205, %v211
      %v214 = vmul.f32 %v200, %v212
      %v216 = vcombine.high %v214, %v214
      %vm218 = vcmask 1043456
      %v219 = vsel %vm218, %v214, -inf
      %v220 = vrot.slane %v219, 4
      %v221 = vmax.f32 %v219, %v220
      %v222 = vrot.slane %v221, 2
      %v223 = vmax.f32 %v221, %v222
      %v224 = vrot.slane %v223, 1
      %v225 = vmax.f32 %v223, %v224
      %v226 = vsel %vm218, %v216, -inf
      %v227 = vrot.slane %v226, 4
      %v228 = vmax.f32 %v226, %v227
      %v229 = vrot.slane %v228, 2
      %v230 = vmax.f32 %v228, %v229
      %v231 = vrot.slane %v230, 1
      %v232 = vmax.f32 %v230, %v231
      %v233 = vsel %vm218, %v214, 0.0
      %v234 = vrot.slane %v233, 4
      %v235 = vadd.f32 %v233, %v234
      %v236 = vrot.slane %v235, 2
      %v237 = vadd.f32 %v235, %v236
      %v238 = vrot.slane %v237, 1
      %v239 = vadd.f32 %v237, %v238
      %v240 = vsel %vm218, %v216, 0.0
      %v241 = vrot.slane %v240, 4
      %v242 = vadd.f32 %v240, %v241
      %v243 = vrot.slane %v242, 2
      %v244 = vadd.f32 %v242, %v243
      %v245 = vrot.slane %v244, 1
      %v246 = vadd.f32 %v244, %v245
      %v247 = vmul.f32 %v239, 0.25
      %v248 = vmul.f32 %v246, 0.25
      %vm249 = vcmask 1040384
      %v250 = vsel %vm249, %v225, %v247
      %v251 = vsel %vm249, %v232, %v248
      %v254 = vcombine.low %v250, %v251
      %v256 = vunpack.c.l.s4 1983009808
      %v257 = vunpack.c.0.s8 %v256
      %v258 = vlaneseq
      %v259 = vshrl.u32 %v258, 7
      %v260 = vsub.s32 %v257, %v259
      %v261 = vrot.slane %v254, %v260
      %263 = vst [vmem:[%s198] sm:$0xf] %v261
      %s264 = smul.u32 2, %s18
      %p265 = scmp.lt.s32.totalorder %s17, 1
      %s266 = scalar_select %p265, %s17, 1
      %p267 = scmp.lt.s32.totalorder %s264, 1
      %s268 = scalar_select %p267, %s264, 1
      %s269 = smul.addr %s266, 2
      %s270 = sadd.s32 %s268, %s269
      %s271 = smul.addr %s270, 2
      %s272 = scalar_lea.vmem %s2, %s271
      // Predicated region
      $region29: #{cbam_forward.4} parent=27 // pred_check
        %p273 = pneg %p99
      $region30: #{cbam_forward.4} parent=27 // pred_check_branch
        %275 = sbr.rel (%p273) target = $region32
      $region31: #{cbam_forward.4} parent=27 // pred_region
        %s276 = smul.u32 2, %s18
      $region32: #{cbam_forward.4} parent=27 // pred_fallthru
        _
    $region28: #{cbam_forward.4} parent=5 // pred_fallthru
      _
    %p277 = scmp.le.s32.totalorder 2, %s8
    // Predicated region
    $region33: #{cbam_forward.4} parent=5 // pred_check
      %p278 = pneg %p277
    $region34: #{cbam_forward.4} parent=5 // pred_check_branch
      %280 = sbr.rel (%p278) target = $region36
    $region35: #{cbam_forward.4} parent=5 // pred_region
      %s281 = ssub.s32 %s8, 2
      // Predicated region
      $region37: #{cbam_forward.4} parent=35 // pred_check
        %p282 = pneg %p105
      $region38: #{cbam_forward.4} parent=35 // pred_check_branch
        %284 = sbr.rel (%p282) target = $region40
      $region39: #{cbam_forward.4} parent=35 // pred_region
        %s285 = smul.u32 2, %s20
        %p286 = scmp.lt.s32.totalorder %s19, 1
        %s287 = scalar_select %p286, %s19, 1
        %p288 = scmp.lt.s32.totalorder %s285, 1
        %s289 = scalar_select %p288, %s285, 1
        %s290 = smul.addr %s287, 2
        %s291 = sadd.s32 %s289, %s290
        %s292 = smul.addr %s291, 2
        %s293 = scalar_lea.vmem %s2, %s292
      $region40: #{cbam_forward.4} parent=35 // pred_fallthru
        _
    $region36: #{cbam_forward.4} parent=5 // pred_fallthru
      _
  $region6: #{cbam_forward.4} parent=0 // loop_footer
    %s12 = sadd.s32 1, %s8
  $region7: #{cbam_forward.4} parent=0 // loop_footer_branch
    %7 = sbr.rel target = $region3
  $region8: #{cbam_forward.4} parent=0 // loop_exit
    _

// kernel: cbam_forward.3
$region0: #{cbam_forward.3}
  #allocation0 [shape = 'u32[]', space=smem, size = 0x4, offset = 0x4, fixed_abs, tag = 'smem constant byte address 0x4 - core index']
  #allocation1 [shape = 'u32[144,128]{1,0:T(1,128)}', space=vmem, size = 0x12000, scoped, tag = 'internal scratch']
  #allocation2 [shape = 'f32[4,1]{1,0:T(4,128)}', space=vmem, size = 0x800, scoped, tag = 'scratch operand']
  #allocation3 [shape = 'f32[4,1]{1,0:T(4,128)}', space=vmem, size = 0x800, scoped, tag = 'scratch operand']
  %s0 = inlined_call_operand.vmem [shape: f32[2,4,256], index: 0, kind: input, shape index: {}]
  %s1 = inlined_call_operand.vmem [shape: f32[2,1,4,2], index: 1, kind: output, shape index: {}]
  %s2 = sld [smem:[#allocation0]]
  $region53: #{cbam_forward.3} parent=0
    _
  %s4 = ssub.s32 1, %s2
  %s5 = scalar_select 0, %s4, %s2
  loop: start=0, step=1, limit=4
  $region2: #{cbam_forward.3} parent=0 // loop_pre_header
    _
  $region3: #{cbam_forward.3} parent=0 // loop_header
    %s7 = sphi 0, %s11
    %p8 = scmp.ge.s32.totalorder %s7, 4
    %s14 = sphi 0, %s33
    %s15 = sphi 0, %s29
    %s16 = sphi 0, %s25
    %s17 = sphi 0, %s14
    %s18 = sphi 0, %s15
    %s19 = sphi 0, %s16
    %s20 = sphi 0, %s17
    %s21 = sphi 0, %s18
    %s22 = sphi 0, %s19
    %s40 = sphi 0, %s42
    %s43 = sphi 0, %s40
    %s44 = sphi 0, %s43
    %s60 = sphi 0, %s44
    %s68 = sphi 0, %s70
    %s71 = sphi 0, %s68
    %s72 = sphi 0, %s71
    %s88 = sphi 0, %s72
  $region4: #{cbam_forward.3} parent=0 // loop_header_branch
    %10 = sbr.rel (%p8) target = $region8
  $region5: #{cbam_forward.3} parent=0 // loop_body
    %s12 = ssub.s32 %s7, 1
    %s13 = ssub.s32 %s7, 2
    %s23 = sadd.s32 1, %s16
    %p24 = scmp.ge.s32.totalorder %s23, 1
    %s25 = scalar_select %p24, 0, %s23
    %s26 = sadd.s32 1, %s15
    %s27 = scalar_select %p24, %s26, %s15
    %p28 = scmp.ge.s32.totalorder %s27, 1
    %s29 = scalar_select %p28, 0, %s27
    %s30 = sadd.s32 1, %s14
    %s31 = scalar_select %p28, %s30, %s14
    %p32 = scmp.ge.s32.totalorder %s31, 2
    %s33 = scalar_select %p32, 0, %s31
    %s34 = sadd.s32 %s15, %s16
    %s35 = sadd.s32 %s29, %s25
    %s36 = ssub.s32 %s14, %s33
    %s37 = ssub.s32 %s34, %s35
    %s38 = sor.u32 %s36, %s37
    %p39 = scmp.eq.s32.totalorder %s38, 0
    %s41 = sadd.s32 %s40, 1
    %s42 = scalar_select %p39, %s40, %s41
    %p45 = pneg %p39
    %p46 = scmp.eq.s32.totalorder %s7, 1
    %p47 = por %p45, %p46
    %p48 = scmp.ne.s32.totalorder %s40, %s43
    %p49 = scmp.eq.s32.totalorder %s7, 0
    %p50 = por %p48, %p49
    %p51 = scmp.ne.s32.totalorder %s40, %s43
    %p52 = scmp.eq.s32.totalorder %s12, 1
    %p53 = por %p51, %p52
    %p54 = scmp.ne.s32.totalorder %s43, %s44
    %p55 = scmp.eq.s32.totalorder %s12, 0
    %p56 = por %p54, %p55
    %p57 = scmp.ne.s32.totalorder %s43, %s44
    %p58 = scmp.eq.s32.totalorder %s13, 1
    %p59 = por %p57, %p58
    %p61 = scmp.ne.s32.totalorder %s44, %s60
    %p62 = scmp.eq.s32.totalorder %s13, 0
    %p63 = por %p61, %p62
    %s64 = ssub.s32 %s14, %s33
    %s65 = ssub.s32 %s15, %s29
    %s66 = sor.u32 %s64, %s65
    %p67 = scmp.eq.s32.totalorder %s66, 0
    %s69 = sadd.s32 %s68, 1
    %s70 = scalar_select %p67, %s68, %s69
    %p73 = pneg %p67
    %p74 = scmp.eq.s32.totalorder %s7, 1
    %p75 = por %p73, %p74
    %p76 = scmp.ne.s32.totalorder %s68, %s71
    %p77 = scmp.eq.s32.totalorder %s7, 0
    %p78 = por %p76, %p77
    %p79 = scmp.ne.s32.totalorder %s68, %s71
    %p80 = scmp.eq.s32.totalorder %s12, 1
    %p81 = por %p79, %p80
    %p82 = scmp.ne.s32.totalorder %s71, %s72
    %p83 = scmp.eq.s32.totalorder %s12, 0
    %p84 = por %p82, %p83
    %p85 = scmp.ne.s32.totalorder %s71, %s72
    %p86 = scmp.eq.s32.totalorder %s13, 1
    %p87 = por %p85, %p86
    %p89 = scmp.ne.s32.totalorder %s72, %s88
    %p90 = scmp.eq.s32.totalorder %s13, 0
    %p91 = por %p89, %p90
    %p92 = scmp.le.s32.totalorder 1, %s7
    %p93 = scmp.lt.s32.totalorder %s7, 3
    %p94 = pnand %p92, %p93
    %p95 = pneg %p94
    // Predicated region
    $region9: #{cbam_forward.3} parent=5 // pred_check
      _
    $region10: #{cbam_forward.3} parent=5 // pred_check_branch
      %97 = sbr.rel (%p94) target = $region12
    $region11: #{cbam_forward.3} parent=5 // pred_region
      %s98 = ssub.s32 %s7, 1
    $region12: #{cbam_forward.3} parent=5 // pred_fallthru
      _
    %p99 = scmp.lt.s32.totalorder %s7, 2
    // Predicated region
    $region13: #{cbam_forward.3} parent=5 // pred_check
      %p100 = pneg %p99
    $region14: #{cbam_forward.3} parent=5 // pred_check_branch
      %102 = sbr.rel (%p100) target = $region16
    $region15: #{cbam_forward.3} parent=5 // pred_region
      // Predicated region
      $region17: #{cbam_forward.3} parent=15 // pred_check
        %p103 = pneg %p50
      $region18: #{cbam_forward.3} parent=15 // pred_check_branch
        %105 = sbr.rel (%p103) target = $region20
      $region19: #{cbam_forward.3} parent=15 // pred_region
        %s106 = sadd.s32 %s15, %s16
        %s107 = smul.u32 2, %s106
        %p108 = scmp.lt.s32.totalorder %s14, 1
        %s109 = scalar_select %p108, %s14, 1
        %p110 = scmp.lt.s32.totalorder %s107, 1
        %s111 = scalar_select %p110, %s107, 1
        %s112 = smul.addr %s109, 2
        %s113 = sadd.s32 %s111, %s112
        %s114 = smul.addr %s113, 4
        %s115 = scalar_lea.vmem %s0, %s114
        %s116 = sadd.s32 %s15, %s16
        %s117 = smul.u32 2, %s116
      $region20: #{cbam_forward.3} parent=15 // pred_fallthru
        _
    $region16: #{cbam_forward.3} parent=5 // pred_fallthru
      _
    %p118 = scmp.le.s32.totalorder 1, %s7
    %p119 = scmp.lt.s32.totalorder %s7, 3
    %p120 = pnand %p118, %p119
    %p121 = pneg %p120
    // Predicated region
    $region21: #{cbam_forward.3} parent=5 // pred_check
      _
    $region22: #{cbam_forward.3} parent=5 // pred_check_branch
      %123 = sbr.rel (%p120) target = $region24
    $region23: #{cbam_forward.3} parent=5 // pred_region
      %s124 = ssub.s32 %s7, 1
      %s125 = sadd.s32 %s18, %s19
      %s126 = smul.u32 2, %s125
      %p127 = scmp.lt.s32.totalorder %s17, 1
      %s128 = scalar_select %p127, %s17, 1
      %p129 = scmp.lt.s32.totalorder %s126, 1
      %s130 = scalar_select %p129, %s126, 1
      %s131 = smul.addr %s128, 2
      %s132 = sadd.s32 %s130, %s131
      %s133 = smul.addr %s132, 4
      %s134 = scalar_lea.vmem %s0, %s133
      %p135 = pneg %p56
      %p136 = pneg %p53
      %p137 = pneg %p84
      %p138 = pneg %p81
      %p139 = scmp.lt.s32.totalorder %s17, 1
      %s140 = scalar_select %p139, %s17, 1
      %p141 = scmp.lt.s32.totalorder %s18, 0
      %s142 = scalar_select %p141, %s18, 0
      %s143 = sadd.s32 %s142, %s140
      %s144 = smul.addr %s143, 4
      %s145 = scalar_lea.vmem %s1, %s144
      %s146 = sadd.s32 %s18, %s19
      %s147 = smul.u32 2, %s146
      %p148 = scmp.lt.s32.totalorder %s17, 1
      %s149 = scalar_select %p148, %s17, 1
      %p150 = scmp.lt.s32.totalorder %s147, 1
      %s151 = scalar_select %p150, %s147, 1
      %s152 = smul.addr %s149, 2
      %s153 = sadd.s32 %s151, %s152
      %s154 = smul.addr %s153, 4
      %s155 = scalar_lea.vmem %s0, %s154
      %s156 = sadd.s32 %s18, %s19
      %s157 = smul.u32 2, %s156
      %p158 = scmp.lt.s32.totalorder %s17, 1
      %s159 = scalar_select %p158, %s17, 1
      %p160 = scmp.lt.s32.totalorder %s18, 0
      %s161 = scalar_select %p160, %s18, 0
      %s162 = sadd.s32 %s161, %s159
      %s163 = smul.addr %s162, 4
      %s164 = scalar_lea.vmem %s1, %s163
      %p165 = scmp.eq.s32.totalorder %s19, 0
      // Predicated region
      $region25: #{cbam_forward.3} parent=23 // pred_check
        %p166 = pneg %p165
      $region26: #{cbam_forward.3} parent=23 // pred_check_branch
        %168 = sbr.rel (%p166) target = $region28
      $region27: #{cbam_forward.3} parent=23 // pred_region
        %vm169 = vcmask 3072
        %170 = vst.msk [vmem:[#allocation2] sm:$0xf] %vm169, 0.0
        %171 = vst.msk [vmem:[#allocation3] sm:$0xf] %vm169, -inf
      $region28: #{cbam_forward.3} parent=23 // pred_fallthru
        _
      %s172 = sadd.s32 %s18, %s19
      %s173 = smul.u32 %s172, 256
      %p174 = scmp.gt.s32.totalorder %s18, 0
      %p175 = scmp.lt.s32.totalorder %s19, 0
      %p176 = pnand %p174, %p175
      %p177 = pneg %p176
      %p178 = pneg %p177
      %s179 = sadd.s32 %s173, 256
      %p180 = scmp.le.s32.totalorder %s179, 256
      %p181 = pnand %p178, %p180
      %p182 = pneg %p181
      %p183 = scmp.gt.s32.totalorder %s179, 256
      %p184 = pnand %p178, %p183
      %p185 = pneg %p184
      %v186 = vld [vmem:[%s155] sm:$0xff]
      // Predicated region
      $region29: #{cbam_forward.3} parent=23 // pred_check
        _
      $region30: #{cbam_forward.3} parent=23 // pred_check_branch
        %188 = sbr.rel (%p181) target = $region32
      $region31: #{cbam_forward.3} parent=23 // pred_region
        %v189 = vld [vmem:[#allocation2] sm:$0xf]
        %v191 = vcombine.high %v186, %v186
        %vm193 = vcmask 1043456
        %v194 = vsel %vm193, %v186, 0.0
        %v195 = vsel %vm193, %v191, 0.0
        %v196 = vadd.f32 %v194, %v195
        %197 = vadd.xlane.f32.xlu0 %v196
        %v198 = vpop.xlane.xlu0 %197
        %v199 = vadd.f32 %v189, %v198
        %vm200 = vcmask 3072
        %201 = vst.msk [vmem:[#allocation2] sm:$0xf] %vm200, %v199
        %v202 = vld [vmem:[#allocation3] sm:$0xf]
        %v203 = vsel %vm193, %v186, -inf
        %v204 = vsel %vm193, %v191, -inf
        %v205 = vmax.f32 %v203, %v204
        %206 = vmax.xlane.f32.xlu0 %v205
        %v207 = vpop.xlane.xlu0 %206
        %v208 = vmax.f32 %v202, %v207
        %209 = vst.msk [vmem:[#allocation3] sm:$0xf] %vm200, %v208
      $region32: #{cbam_forward.3} parent=23 // pred_fallthru
        _
      // Predicated region
      $region33: #{cbam_forward.3} parent=23 // pred_check
        _
      $region34: #{cbam_forward.3} parent=23 // pred_check_branch
        %211 = sbr.rel (%p184) target = $region36
      $region35: #{cbam_forward.3} parent=23 // pred_region
        %v212 = vlaneseq
        %v213 = vand.u32 %v212, 127
        %v214 = vadd.s32 %v213, 128
        %v215 = vstv %s173
        %v216 = vadd.s32 %v213, %v215
        %v217 = vadd.s32 %v214, %v215
        %vm218 = vcmp.lt.s32.totalorder %v216, 256
        %vm219 = vcmp.lt.s32.totalorder %v217, 256
        %v220 = vld [vmem:[#allocation2] sm:$0xf]
        %v222 = vcombine.high %v186, %v186
        %v224 = vsel %vm218, %v186, 0.0
        %v225 = vsel %vm219, %v222, 0.0
        %vm226 = vcmask 1043456
        %v227 = vsel %vm226, %v224, 0.0
        %v228 = vsel %vm226, %v225, 0.0
        %v229 = vadd.f32 %v227, %v228
        %230 = vadd.xlane.f32.xlu0 %v229
        %v231 = vpop.xlane.xlu0 %230
        %v232 = vadd.f32 %v220, %v231
        %vm233 = vcmask 3072
        %234 = vst.msk [vmem:[#allocation2] sm:$0xf] %vm233, %v232
        %v235 = vld [vmem:[#allocation3] sm:$0xf]
        %v236 = vsel %vm218, %v186, -inf
        %v237 = vsel %vm219, %v222, -inf
        %v238 = vsel %vm226, %v236, -inf
        %v239 = vsel %vm226, %v237, -inf
        %v240 = vmax.f32 %v238, %v239
        %241 = vmax.xlane.f32.xlu0 %v240
        %v242 = vpop.xlane.xlu0 %241
        %v243 = vmax.f32 %v235, %v242
        %244 = vst.msk [vmem:[#allocation3] sm:$0xf] %vm233, %v243
      $region36: #{cbam_forward.3} parent=23 // pred_fallthru
        _
      // Predicated region
      $region37: #{cbam_forward.3} parent=23 // pred_check
        %p245 = pneg %p165
      $region38: #{cbam_forward.3} parent=23 // pred_check_branch
        %247 = sbr.rel (%p245) target = $region40
      $region39: #{cbam_forward.3} parent=23 // pred_region
        %v248 = vld [vmem:[#allocation2] sm:$0xf]
        %v249 = vld [vmem:[#allocation3] sm:$0xf]
        %251 = vrot.lane.b32.xlu0 %v249, 1
        %v252 = vpop.permute.xlu0 %251
        %vm254 = vcmask 7168
        %v255 = vsel %vm254, %v248, %v252
        %vm256 = vcmask 11264
        %257 = vst.msk [vmem:[%s164] sm:$0xf] %vm256, %v255
      $region40: #{cbam_forward.3} parent=23 // pred_fallthru
        _
      %p258 = scmp.lt.s32.totalorder %s17, 1
      %s259 = scalar_select %p258, %s17, 1
      %p260 = scmp.lt.s32.totalorder %s18, 0
      %s261 = scalar_select %p260, %s18, 0
      %s262 = sadd.s32 %s261, %s259
      %s263 = smul.addr %s262, 4
      %s264 = scalar_lea.vmem %s1, %s263
      // Predicated region
      $region41: #{cbam_forward.3} parent=23 // pred_check
        %p265 = pneg %p81
      $region42: #{cbam_forward.3} parent=23 // pred_check_branch
        %267 = sbr.rel (%p265) target = $region44
      $region43: #{cbam_forward.3} parent=23 // pred_region
        _
      $region44: #{cbam_forward.3} parent=23 // pred_fallthru
        _
    $region24: #{cbam_forward.3} parent=5 // pred_fallthru
      _
    %p268 = scmp.le.s32.totalorder 2, %s7
    // Predicated region
    $region45: #{cbam_forward.3} parent=5 // pred_check
      %p269 = pneg %p268
    $region46: #{cbam_forward.3} parent=5 // pred_check_branch
      %271 = sbr.rel (%p269) target = $region48
    $region47: #{cbam_forward.3} parent=5 // pred_region
      %s272 = ssub.s32 %s7, 2
      // Predicated region
      $region49: #{cbam_forward.3} parent=47 // pred_check
        %p273 = pneg %p87
      $region50: #{cbam_forward.3} parent=47 // pred_check_branch
        %275 = sbr.rel (%p273) target = $region52
      $region51: #{cbam_forward.3} parent=47 // pred_region
        %p276 = scmp.lt.s32.totalorder %s20, 1
        %s277 = scalar_select %p276, %s20, 1
        %p278 = scmp.lt.s32.totalorder %s21, 0
        %s279 = scalar_select %p278, %s21, 0
        %s280 = sadd.s32 %s279, %s277
        %s281 = smul.addr %s280, 4
        %s282 = scalar_lea.vmem %s1, %s281
      $region52: #{cbam_forward.3} parent=47 // pred_fallthru
        _
    $region48: #{cbam_forward.3} parent=5 // pred_fallthru
      _
  $region6: #{cbam_forward.3} parent=0 // loop_footer
    %s11 = sadd.s32 1, %s7
  $region7: #{cbam_forward.3} parent=0 // loop_footer_branch
    %6 = sbr.rel target = $region3
  $region8: #{cbam_forward.3} parent=0 // loop_exit
    _

// kernel: cbam_forward.5
$region0: #{cbam_forward.5}
  #allocation0 [shape = 'u32[]', space=smem, size = 0x4, offset = 0x4, fixed_abs, tag = 'smem constant byte address 0x4 - core index']
  #allocation1 [shape = 'u32[144,128]{1,0:T(1,128)}', space=vmem, size = 0x12000, scoped, tag = 'internal scratch']
  %s0 = inlined_call_operand.vmem [shape: f32[2,4,256], index: 0, kind: input, shape index: {}]
  %s1 = inlined_call_operand.vmem [shape: f32[2,4,1], index: 1, kind: input, shape index: {}]
  %s2 = inlined_call_operand.vmem [shape: f32[2,1,256], index: 2, kind: input, shape index: {}]
  %s3 = inlined_call_operand.vmem [shape: f32[2,4,256], index: 3, kind: output, shape index: {}]
  %s4 = sld [smem:[#allocation0]]
  $region45: #{cbam_forward.5} parent=0
    _
  %s6 = ssub.s32 1, %s4
  %s7 = scalar_select 0, %s6, %s4
  loop: start=0, step=1, limit=4
  $region2: #{cbam_forward.5} parent=0 // loop_pre_header
    _
  $region3: #{cbam_forward.5} parent=0 // loop_header
    %s9 = sphi 0, %s13
    %p10 = scmp.ge.s32.totalorder %s9, 4
    %s16 = sphi 0, %s28
    %s17 = sphi 0, %s24
    %s18 = sphi 0, %s16
    %s19 = sphi 0, %s17
    %s20 = sphi 0, %s18
    %s21 = sphi 0, %s19
    %s33 = sphi 0, %s35
    %s36 = sphi 0, %s33
    %s37 = sphi 0, %s36
    %s53 = sphi 0, %s37
    %s59 = sphi 0, %s61
    %s62 = sphi 0, %s59
    %s63 = sphi 0, %s62
    %s79 = sphi 0, %s63
    %s87 = sphi 0, %s89
    %s90 = sphi 0, %s87
    %s91 = sphi 0, %s90
    %s107 = sphi 0, %s91
    %s115 = sphi 0, %s117
    %s118 = sphi 0, %s115
    %s119 = sphi 0, %s118
    %s135 = sphi 0, %s119
  $region4: #{cbam_forward.5} parent=0 // loop_header_branch
    %12 = sbr.rel (%p10) target = $region8
  $region5: #{cbam_forward.5} parent=0 // loop_body
    %s14 = ssub.s32 %s9, 1
    %s15 = ssub.s32 %s9, 2
    %s22 = sadd.s32 1, %s17
    %p23 = scmp.ge.s32.totalorder %s22, 1
    %s24 = scalar_select %p23, 0, %s22
    %s25 = sadd.s32 1, %s16
    %s26 = scalar_select %p23, %s25, %s16
    %p27 = scmp.ge.s32.totalorder %s26, 2
    %s28 = scalar_select %p27, 0, %s26
    %s29 = ssub.s32 %s16, %s28
    %s30 = ssub.s32 %s17, %s24
    %s31 = sor.u32 %s29, %s30
    %p32 = scmp.eq.s32.totalorder %s31, 0
    %s34 = sadd.s32 %s33, 1
    %s35 = scalar_select %p32, %s33, %s34
    %p38 = pneg %p32
    %p39 = scmp.eq.s32.totalorder %s9, 1
    %p40 = por %p38, %p39
    %p41 = scmp.ne.s32.totalorder %s33, %s36
    %p42 = scmp.eq.s32.totalorder %s9, 0
    %p43 = por %p41, %p42
    %p44 = scmp.ne.s32.totalorder %s33, %s36
    %p45 = scmp.eq.s32.totalorder %s14, 1
    %p46 = por %p44, %p45
    %p47 = scmp.ne.s32.totalorder %s36, %s37
    %p48 = scmp.eq.s32.totalorder %s14, 0
    %p49 = por %p47, %p48
    %p50 = scmp.ne.s32.totalorder %s36, %s37
    %p51 = scmp.eq.s32.totalorder %s15, 1
    %p52 = por %p50, %p51
    %p54 = scmp.ne.s32.totalorder %s37, %s53
    %p55 = scmp.eq.s32.totalorder %s15, 0
    %p56 = por %p54, %p55
    %s57 = ssub.s32 %s16, %s28
    %p58 = scmp.eq.s32.totalorder %s57, 0
    %s60 = sadd.s32 %s59, 1
    %s61 = scalar_select %p58, %s59, %s60
    %p64 = pneg %p58
    %p65 = scmp.eq.s32.totalorder %s9, 1
    %p66 = por %p64, %p65
    %p67 = scmp.ne.s32.totalorder %s59, %s62
    %p68 = scmp.eq.s32.totalorder %s9, 0
    %p69 = por %p67, %p68
    %p70 = scmp.ne.s32.totalorder %s59, %s62
    %p71 = scmp.eq.s32.totalorder %s14, 1
    %p72 = por %p70, %p71
    %p73 = scmp.ne.s32.totalorder %s62, %s63
    %p74 = scmp.eq.s32.totalorder %s14, 0
    %p75 = por %p73, %p74
    %p76 = scmp.ne.s32.totalorder %s62, %s63
    %p77 = scmp.eq.s32.totalorder %s15, 1
    %p78 = por %p76, %p77
    %p80 = scmp.ne.s32.totalorder %s63, %s79
    %p81 = scmp.eq.s32.totalorder %s15, 0
    %p82 = por %p80, %p81
    %s83 = ssub.s32 %s16, %s28
    %s84 = ssub.s32 %s17, %s24
    %s85 = sor.u32 %s83, %s84
    %p86 = scmp.eq.s32.totalorder %s85, 0
    %s88 = sadd.s32 %s87, 1
    %s89 = scalar_select %p86, %s87, %s88
    %p92 = pneg %p86
    %p93 = scmp.eq.s32.totalorder %s9, 1
    %p94 = por %p92, %p93
    %p95 = scmp.ne.s32.totalorder %s87, %s90
    %p96 = scmp.eq.s32.totalorder %s9, 0
    %p97 = por %p95, %p96
    %p98 = scmp.ne.s32.totalorder %s87, %s90
    %p99 = scmp.eq.s32.totalorder %s14, 1
    %p100 = por %p98, %p99
    %p101 = scmp.ne.s32.totalorder %s90, %s91
    %p102 = scmp.eq.s32.totalorder %s14, 0
    %p103 = por %p101, %p102
    %p104 = scmp.ne.s32.totalorder %s90, %s91
    %p105 = scmp.eq.s32.totalorder %s15, 1
    %p106 = por %p104, %p105
    %p108 = scmp.ne.s32.totalorder %s91, %s107
    %p109 = scmp.eq.s32.totalorder %s15, 0
    %p110 = por %p108, %p109
    %s111 = ssub.s32 %s16, %s28
    %s112 = ssub.s32 %s17, %s24
    %s113 = sor.u32 %s111, %s112
    %p114 = scmp.eq.s32.totalorder %s113, 0
    %s116 = sadd.s32 %s115, 1
    %s117 = scalar_select %p114, %s115, %s116
    %p120 = pneg %p114
    %p121 = scmp.eq.s32.totalorder %s9, 1
    %p122 = por %p120, %p121
    %p123 = scmp.ne.s32.totalorder %s115, %s118
    %p124 = scmp.eq.s32.totalorder %s9, 0
    %p125 = por %p123, %p124
    %p126 = scmp.ne.s32.totalorder %s115, %s118
    %p127 = scmp.eq.s32.totalorder %s14, 1
    %p128 = por %p126, %p127
    %p129 = scmp.ne.s32.totalorder %s118, %s119
    %p130 = scmp.eq.s32.totalorder %s14, 0
    %p131 = por %p129, %p130
    %p132 = scmp.ne.s32.totalorder %s118, %s119
    %p133 = scmp.eq.s32.totalorder %s15, 1
    %p134 = por %p132, %p133
    %p136 = scmp.ne.s32.totalorder %s119, %s135
    %p137 = scmp.eq.s32.totalorder %s15, 0
    %p138 = por %p136, %p137
    %p139 = scmp.le.s32.totalorder 1, %s9
    %p140 = scmp.lt.s32.totalorder %s9, 3
    %p141 = pnand %p139, %p140
    %p142 = pneg %p141
    // Predicated region
    $region9: #{cbam_forward.5} parent=5 // pred_check
      _
    $region10: #{cbam_forward.5} parent=5 // pred_check_branch
      %144 = sbr.rel (%p141) target = $region12
    $region11: #{cbam_forward.5} parent=5 // pred_region
      %s145 = ssub.s32 %s9, 1
    $region12: #{cbam_forward.5} parent=5 // pred_fallthru
      _
    %p146 = scmp.lt.s32.totalorder %s9, 2
    // Predicated region
    $region13: #{cbam_forward.5} parent=5 // pred_check
      %p147 = pneg %p146
    $region14: #{cbam_forward.5} parent=5 // pred_check_branch
      %149 = sbr.rel (%p147) target = $region16
    $region15: #{cbam_forward.5} parent=5 // pred_region
      // Predicated region
      $region17: #{cbam_forward.5} parent=15 // pred_check
        %p150 = pneg %p43
      $region18: #{cbam_forward.5} parent=15 // pred_check_branch
        %152 = sbr.rel (%p150) target = $region20
      $region19: #{cbam_forward.5} parent=15 // pred_region
        %s153 = smul.u32 2, %s17
        %p154 = scmp.lt.s32.totalorder %s16, 1
        %s155 = scalar_select %p154, %s16, 1
        %p156 = scmp.lt.s32.totalorder %s153, 1
        %s157 = scalar_select %p156, %s153, 1
        %s158 = smul.addr %s155, 2
        %s159 = sadd.s32 %s157, %s158
        %s160 = smul.addr %s159, 4
        %s161 = scalar_lea.vmem %s0, %s160
        %s162 = smul.u32 2, %s17
      $region20: #{cbam_forward.5} parent=15 // pred_fallthru
        _
      // Predicated region
      $region21: #{cbam_forward.5} parent=15 // pred_check
        %p163 = pneg %p69
      $region22: #{cbam_forward.5} parent=15 // pred_check_branch
        %165 = sbr.rel (%p163) target = $region24
      $region23: #{cbam_forward.5} parent=15 // pred_region
        %p166 = scmp.lt.s32.totalorder %s16, 1
        %s167 = scalar_select %p166, %s16, 1
        %s168 = smul.addr %s167, 4
        %s169 = scalar_lea.vmem %s1, %s168
      $region24: #{cbam_forward.5} parent=15 // pred_fallthru
        _
      // Predicated region
      $region25: #{cbam_forward.5} parent=15 // pred_check
        %p170 = pneg %p97
      $region26: #{cbam_forward.5} parent=15 // pred_check_branch
        %172 = sbr.rel (%p170) target = $region28
      $region27: #{cbam_forward.5} parent=15 // pred_region
        %s173 = smul.u32 2, %s17
        %p174 = scmp.lt.s32.totalorder %s16, 1
        %s175 = scalar_select %p174, %s16, 1
        %p176 = scmp.lt.s32.totalorder %s173, 1
        %s177 = scalar_select %p176, %s173, 1
        %s178 = smul.addr %s175, 2
        %s179 = sadd.s32 %s177, %s178
        %s180 = scalar_lea.vmem %s2, %s179
        %s181 = smul.u32 2, %s17
      $region28: #{cbam_forward.5} parent=15 // pred_fallthru
        _
    $region16: #{cbam_forward.5} parent=5 // pred_fallthru
      _
    %p182 = scmp.le.s32.totalorder 1, %s9
    %p183 = scmp.lt.s32.totalorder %s9, 3
    %p184 = pnand %p182, %p183
    %p185 = pneg %p184
    // Predicated region
    $region29: #{cbam_forward.5} parent=5 // pred_check
      _
    $region30: #{cbam_forward.5} parent=5 // pred_check_branch
      %187 = sbr.rel (%p184) target = $region32
    $region31: #{cbam_forward.5} parent=5 // pred_region
      %s188 = ssub.s32 %s9, 1
      %s189 = smul.u32 2, %s19
      %p190 = scmp.lt.s32.totalorder %s18, 1
      %s191 = scalar_select %p190, %s18, 1
      %p192 = scmp.lt.s32.totalorder %s189, 1
      %s193 = scalar_select %p192, %s189, 1
      %s194 = smul.addr %s191, 2
      %s195 = sadd.s32 %s193, %s194
      %s196 = smul.addr %s195, 4
      %s197 = scalar_lea.vmem %s0, %s196
      %p198 = pneg %p49
      %p199 = pneg %p46
      %p200 = scmp.lt.s32.totalorder %s18, 1
      %s201 = scalar_select %p200, %s18, 1
      %s202 = smul.addr %s201, 4
      %s203 = scalar_lea.vmem %s1, %s202
      %p204 = pneg %p75
      %p205 = pneg %p72
      %s206 = smul.u32 2, %s19
      %p207 = scmp.lt.s32.totalorder %s18, 1
      %s208 = scalar_select %p207, %s18, 1
      %p209 = scmp.lt.s32.totalorder %s206, 1
      %s210 = scalar_select %p209, %s206, 1
      %s211 = smul.addr %s208, 2
      %s212 = sadd.s32 %s210, %s211
      %s213 = scalar_lea.vmem %s2, %s212
      %p214 = pneg %p103
      %p215 = pneg %p100
      %p216 = pneg %p131
      %p217 = pneg %p128
      %s218 = smul.u32 2, %s19
      %p219 = scmp.lt.s32.totalorder %s18, 1
      %s220 = scalar_select %p219, %s18, 1
      %p221 = scmp.lt.s32.totalorder %s218, 1
      %s222 = scalar_select %p221, %s218, 1
      %s223 = smul.addr %s220, 2
      %s224 = sadd.s32 %s222, %s223
      %s225 = smul.addr %s224, 4
      %s226 = scalar_lea.vmem %s3, %s225
      %s227 = smul.u32 2, %s19
      %p228 = scmp.lt.s32.totalorder %s18, 1
      %s229 = scalar_select %p228, %s18, 1
      %p230 = scmp.lt.s32.totalorder %s227, 1
      %s231 = scalar_select %p230, %s227, 1
      %s232 = smul.addr %s229, 2
      %s233 = sadd.s32 %s231, %s232
      %s234 = smul.addr %s233, 4
      %s235 = scalar_lea.vmem %s0, %s234
      %s236 = smul.u32 2, %s19
      %p237 = scmp.lt.s32.totalorder %s18, 1
      %s238 = scalar_select %p237, %s18, 1
      %s239 = smul.addr %s238, 4
      %s240 = scalar_lea.vmem %s1, %s239
      %s241 = smul.u32 2, %s19
      %p242 = scmp.lt.s32.totalorder %s18, 1
      %s243 = scalar_select %p242, %s18, 1
      %p244 = scmp.lt.s32.totalorder %s241, 1
      %s245 = scalar_select %p244, %s241, 1
      %s246 = smul.addr %s243, 2
      %s247 = sadd.s32 %s245, %s246
      %s248 = scalar_lea.vmem %s2, %s247
      %s249 = smul.u32 2, %s19
      %s250 = smul.u32 2, %s19
      %p251 = scmp.lt.s32.totalorder %s18, 1
      %s252 = scalar_select %p251, %s18, 1
      %p253 = scmp.lt.s32.totalorder %s250, 1
      %s254 = scalar_select %p253, %s250, 1
      %s255 = smul.addr %s252, 2
      %s256 = sadd.s32 %s254, %s255
      %s257 = smul.addr %s256, 4
      %s258 = scalar_lea.vmem %s3, %s257
      %s259 = smul.u32 2, %s19
      %v260 = vld [vmem:[%s235] sm:$0xff]
      %v261 = vld [vmem:[%s240] sm:$0xf]
      %263 = vset.pattern.permute.xlu0 0
      %264 = vperm.xlu0 %263, %v261
      %v265 = vpop.permute.xlu0 %264
      %v267 = vunpack.c.l.s4 839922192
      %v268 = vunpack.c.0.s8 %v267
      %v269 = vlaneseq
      %v270 = vshrl.u32 %v269, 7
      %v271 = vsub.s32 %v268, %v270
      %v272 = vrot.slane %v265, %v271
      %v274 = vmul.f32 %v260, %v272
      %v275 = vld [vmem:[%s248] sm:$0x3]
      %v277 = vlaneseq
      %v278 = vshrl.u32 %v277, 7
      %v279 = vsub.s32 0, %v278
      %v280 = vrot.slane %v275, %v279
      %v281 = vlaneseq
      %v282 = vshrl.u32 %v281, 7
      %v283 = vsub.s32 1, %v282
      %v284 = vrot.slane %v275, %v283
      %v285 = vcombine.low %v280, %v284
      %v287 = vmul.f32 %v274, %v285
      %288 = vst [vmem:[%s258] sm:$0xff] %v287
      %s289 = smul.u32 2, %s19
      %p290 = scmp.lt.s32.totalorder %s18, 1
      %s291 = scalar_select %p290, %s18, 1
      %p292 = scmp.lt.s32.totalorder %s289, 1
      %s293 = scalar_select %p292, %s289, 1
      %s294 = smul.addr %s291, 2
      %s295 = sadd.s32 %s293, %s294
      %s296 = smul.addr %s295, 4
      %s297 = scalar_lea.vmem %s3, %s296
      // Predicated region
      $region33: #{cbam_forward.5} parent=31 // pred_check
        %p298 = pneg %p128
      $region34: #{cbam_forward.5} parent=31 // pred_check_branch
        %300 = sbr.rel (%p298) target = $region36
      $region35: #{cbam_forward.5} parent=31 // pred_region
        %s301 = smul.u32 2, %s19
      $region36: #{cbam_forward.5} parent=31 // pred_fallthru
        _
    $region32: #{cbam_forward.5} parent=5 // pred_fallthru
      _
    %p302 = scmp.le.s32.totalorder 2, %s9
    // Predicated region
    $region37: #{cbam_forward.5} parent=5 // pred_check
      %p303 = pneg %p302
    $region38: #{cbam_forward.5} parent=5 // pred_check_branch
      %305 = sbr.rel (%p303) target = $region40
    $region39: #{cbam_forward.5} parent=5 // pred_region
      %s306 = ssub.s32 %s9, 2
      // Predicated region
      $region41: #{cbam_forward.5} parent=39 // pred_check
        %p307 = pneg %p134
      $region42: #{cbam_forward.5} parent=39 // pred_check_branch
        %309 = sbr.rel (%p307) target = $region44
      $region43: #{cbam_forward.5} parent=39 // pred_region
        %s310 = smul.u32 2, %s21
        %p311 = scmp.lt.s32.totalorder %s20, 1
        %s312 = scalar_select %p311, %s20, 1
        %p313 = scmp.lt.s32.totalorder %s310, 1
        %s314 = scalar_select %p313, %s310, 1
        %s315 = smul.addr %s312, 2
        %s316 = sadd.s32 %s314, %s315
        %s317 = smul.addr %s316, 4
        %s318 = scalar_lea.vmem %s3, %s317
      $region44: #{cbam_forward.5} parent=39 // pred_fallthru
        _
    $region40: #{cbam_forward.5} parent=5 // pred_fallthru
      _
  $region6: #{cbam_forward.5} parent=0 // loop_footer
    %s13 = sadd.s32 1, %s9
  $region7: #{cbam_forward.5} parent=0 // loop_footer_branch
    %8 = sbr.rel target = $region3
  $region8: #{cbam_forward.5} parent=0 // loop_exit
    _

</llo_original>
